<compile_context>
chip_gen: v6e
topology: v6e:2x2x1
jax: 0.10.0
libtpu: 0.0.40
codegen_flags: <defaults>
</compile_context>

<pallas_src>
import math
import jax
import jax.numpy as jnp
from jax.experimental import pallas as pl
from jax.experimental.pallas import tpu as pltpu


# -----------------------------------------------------------------------------
# Kernel: n_j = sigmoid(<src*rel*w, neg_j> + b) for a (tile_b, tile_n) tile.
# -----------------------------------------------------------------------------
def _neg_score_kernel(src_ref, rel_ref, neg_ref, w_ref, b_ref, nscore_ref):
    # src/rel: (tile_b, 1, D)   neg: (tile_b, tile_n, D)   w: (1, 1, D) f32 VMEM
    # b: (1, 1) f32 SMEM        nscore: (tile_b, 1, tile_n) f32  <- lane dense
    bias = b_ref[0, 0]

    # Fold the Linear weight into the (src*rel) factor.  Done in f32 for accuracy,
    # then cast once to neg's dtype so the contraction runs homogeneous on the MXU
    # (bf16 x bf16 when neg is streamed as bf16), accumulating in f32.
    # NOTE: recomputed per j-tile (cost ~ tile_b*D VPU ops, ~1/tile_n of the
    # contraction) because caching it in scratch would force the j axis to
    # "arbitrary" and cost v7x megacore parallelism.
    hrw = (src_ref[...].astype(jnp.float32)
           * rel_ref[...].astype(jnp.float32)
           * w_ref[...])                                   # (tile_b, 1, D) f32

    # Batched contraction over D: (tile_b,1,D) x (tile_b,tile_n,D) -> (tile_b,1,tile_n)
    # Explicit dot_general (batch=b, contract=D) so it lands on the MXU.
    n_logit = jax.lax.dot_general(
        hrw.astype(neg_ref.dtype), neg_ref[...],
        dimension_numbers=(((2,), (2,)), ((0,), (0,))),
        preferred_element_type=jnp.float32)
    nscore_ref[...] = jax.nn.sigmoid(n_logit + bias)       # EUP


# -----------------------------------------------------------------------------
# Generation-aware VMEM plan: (per-neg-block budget, vmem_limit_bytes).
# Pallas double-buffers each input, so resident neg footprint ~= 2x the block.
# -----------------------------------------------------------------------------
def _vmem_plan():
    kind = ""
    try:
        kind = jax.devices()[0].device_kind.lower()
    except Exception:
        pass
    if "v7" in kind:
        # 64 MiB physical VMEM / TC: keep 2x(neg block) + inputs/outputs < ~48 MiB.
        return 12 << 20, 48 << 20
    if "v5 lite" in kind or "v5lite" in kind or "v5e" in kind:
        # 128 MiB physical but 16 MiB scoped default: raise the limit, modest blocks.
        return 6 << 20, 64 << 20
    if "v6" in kind or "v5" in kind or "v4" in kind:
        # v6e / v5p: 128 MiB physical VMEM; large blocks amortize per-step overhead.
        return 16 << 20, 100 << 20
    # Unknown chip: stay conservative.
    return 8 << 20, 48 << 20


def _round_up(x, m):
    return ((x + m - 1) // m) * m


# -----------------------------------------------------------------------------
# Tile selection, aware of VMEM layout padding (lanes -> 128, sublanes -> 8).
# -----------------------------------------------------------------------------
def _choose_tiles(B, N, D, itemsize, per_block_budget):
    d_pad = _round_up(D, 128)                       # lane padding of the neg block
    bytes_per_row = max(1, itemsize * d_pad)
    max_rows = max(8, per_block_budget // bytes_per_row)   # rows per neg block

    if N <= max_rows:
        tile_n = N                                  # single candidate tile (full dim)
        n_pad = N
    else:
        # lane-dense n_score output block => tile_n multiple of 128 (also covers
        # the sublane requirement of the neg block, incl. bf16 (16,128) packing).
        tile_n = max(128, (max_rows // 128) * 128)
        n_pad = _round_up(N, tile_n)

    rows_per_b = _round_up(tile_n, 8)               # sublane padding per batch row
    cap_b = max(1, max_rows // rows_per_b)
    if B >= 2:
        cap_b = min(cap_b, max(1, B // 2))          # >= 2 parallel i-steps (megacore)
    tile_b = 1
    for t in range(min(B, cap_b), 0, -1):           # largest divisor of B in budget
        if B % t == 0:
            tile_b = t
            break
    return tile_b, tile_n, n_pad


# -----------------------------------------------------------------------------
# Wrapper
# -----------------------------------------------------------------------------
def fused_hypergraph_scores(src, rel, other, neg, w, b, *, neg_dtype=None):
    """Returns (p_score (B,1,1), n_score (B,N,1)) with
       p_score = sigmoid(<src*rel*other, w> + b)
       n_score = sigmoid(<src*rel*neg,   w> + b).

    `neg_dtype=jnp.bfloat16` streams the dominant operand at half the HBM bytes;
    the contraction still accumulates in f32 and scores are returned in f32."""
    B, one, D = src.shape
    assert one == 1 and rel.shape == src.shape and other.shape == src.shape
    Bn, N, Dn = neg.shape
    assert Bn == B and Dn == D

    if neg_dtype is not None and neg.dtype != jnp.dtype(neg_dtype):
        neg = neg.astype(neg_dtype)                 # cast once in the wrapper

    per_block_budget, vmem_limit = _vmem_plan()
    tile_b, tile_n, n_pad = _choose_tiles(
        B, N, D, jnp.dtype(neg.dtype).itemsize, per_block_budget)
    if n_pad != N:
        # Padded columns produce sigmoid(bias); they are sliced off below and must
        # never be folded into an in-kernel reduction without masking.
        neg = jnp.pad(neg, ((0, 0), (0, n_pad - N), (0, 0)))

    w3 = w.reshape(1, 1, D).astype(jnp.float32)
    b2 = jnp.asarray(b, jnp.float32).reshape(1, 1)

    grid = (B // tile_b, n_pad // tile_n)

    # TODO(synk): if profiling on v7x still shows exposed DMA per step, add
    #             pipeline_mode=pl.Buffered(3) on the neg BlockSpec (re-check VMEM).
    n_score = pl.pallas_call(
        _neg_score_kernel,
        out_shape=jax.ShapeDtypeStruct((B, 1, n_pad), jnp.float32),
        grid_spec=pltpu.PrefetchScalarGridSpec(
            num_scalar_prefetch=0,
            grid=grid,
            in_specs=[
                pl.BlockSpec((tile_b, 1, D), lambda i, j: (i, 0, 0)),        # src
                pl.BlockSpec((tile_b, 1, D), lambda i, j: (i, 0, 0)),        # rel
                pl.BlockSpec((tile_b, tile_n, D), lambda i, j: (i, j, 0)),   # neg
                pl.BlockSpec((1, 1, D), lambda i, j: (0, 0, 0)),             # weight
                pl.BlockSpec(memory_space=pltpu.MemorySpace.SMEM),           # bias
            ],
            out_specs=pl.BlockSpec((tile_b, 1, tile_n), lambda i, j: (i, 0, j)),
        ),
        compiler_params=pltpu.CompilerParams(
            dimension_semantics=("parallel", "parallel"),
            vmem_limit_bytes=vmem_limit),
    )(src, rel, neg, w3, b2)

    n_score = n_score[:, 0, :N].reshape(B, N, 1)

    # Positive score is O(B*D): trivial in plain JAX, and keeping it out of the
    # kernel removes the only output block revisited across j (so both grid axes
    # stay "parallel" for v7x megacore).
    p_logit = jnp.sum(src.astype(jnp.float32) * rel.astype(jnp.float32)
                      * other.astype(jnp.float32) * w3, axis=-1, keepdims=True)
    p_score = jax.nn.sigmoid(p_logit + b2[0, 0])
    return p_score, n_score


# -----------------------------------------------------------------------------
# HyperGraphV4 (scoring / loss path); hot path runs in the Pallas kernel.
# -----------------------------------------------------------------------------
class HyperGraphV4Pallas:
    def __init__(self, embedding_dim, key):
        self.emb_size = embedding_dim
        # torch.nn.Linear(D, 1) default init: U(-1/sqrt(D), 1/sqrt(D))
        stdv = 1.0 / math.sqrt(embedding_dim)
        kw, kb = jax.random.split(key)
        self.ce_w = jax.random.uniform(kw, (embedding_dim,), jnp.float32,
                                       minval=-stdv, maxval=stdv)
        self.ce_b = jax.random.uniform(kb, (), jnp.float32,
                                       minval=-stdv, maxval=stdv)

    def ce_predictor(self, emb):
        # Convenience (non-hot-path) equivalent of Sequential(Linear, Sigmoid).
        return jax.nn.sigmoid(jnp.einsum("...d,d->...", emb, self.ce_w)[..., None]
                              + self.ce_b)

    def train_step_forward(self, head, tail, neg_emb, rel_emb, mode="hr_t",
                           neg_dtype=None):
        """Mirrors HyperGraphV4.train_step forward math (no autograd/optimizer).

        head, tail, rel_emb: (B, 1, D)    neg_emb: (B, N, D)
        Returns (loss, p_score, neg_score).
        """
        if mode == "hr_t":
            src, other = head, tail
        else:
            src, other = tail, head
        # src*rel*other == head*rel*tail in both modes (elementwise commutativity),
        # and the negatives use `src` exactly as in the PyTorch module.
        p_score, neg_score = fused_hypergraph_scores(
            src, rel_emb, other, neg_emb, self.ce_w, self.ce_b, neg_dtype=neg_dtype)

        # BCELoss (mean reduction), labels 1 for pos / 0 for neg.
        # torch.nn.BCELoss clamps log at -100; match that for saturated scores.
        p_loss = -jnp.mean(jnp.maximum(jnp.log(p_score), -100.0))
        n_loss = -jnp.mean(jnp.maximum(jnp.log(1.0 - neg_score), -100.0))
        loss = p_loss + n_loss
        return loss, p_score, neg_score


# -----------------------------------------------------------------------------
# Reference (pure JAX) for sanity checking
# -----------------------------------------------------------------------------
def _ref_scores(head, tail, neg, rel, w, b, mode="hr_t"):
    pos = head * rel * tail
    p = jax.nn.sigmoid(jnp.einsum("bnd,d->bn", pos, w)[..., None] + b)
    src = head if mode == "hr_t" else tail
    nscored = src * rel * neg
    n = jax.nn.sigmoid(jnp.einsum("bnd,d->bn", nscored, w)[..., None] + b)
    return p, n


if __name__ == "__main__":
    B, N, D = 2, 4, 32   # batch, negative samples, embedding_dim

    key = jax.random.PRNGKey(0)
    k_model, k_h, k_t, k_r, k_n = jax.random.split(key, 5)

    model = HyperGraphV4Pallas(D, k_model)

    head = jax.random.normal(k_h, (B, 1, D), jnp.float32)
    tail = jax.random.normal(k_t, (B, 1, D), jnp.float32)
    rel = jax.random.normal(k_r, (B, 1, D), jnp.float32)
    neg = jax.random.normal(k_n, (B, N, D), jnp.float32)

    p_ref, n_ref = _ref_scores(head, tail, neg, rel, model.ce_w, model.ce_b, "hr_t")

    # ---- full-precision path (exact) ----
    loss, p_score, neg_score = model.train_step_forward(head, tail, neg, rel, mode="hr_t")
    jax.block_until_ready((loss, p_score, neg_score))
    assert p_score.shape == (B, 1, 1) and neg_score.shape == (B, N, 1)
    assert jnp.allclose(p_score, p_ref, atol=1e-4), "pos score mismatch (f32)"
    assert jnp.allclose(neg_score, n_ref, atol=1e-4), "neg score mismatch (f32)"
    assert bool(jnp.isfinite(loss)), "loss not finite (f32)"

    # ---- bf16-streamed negatives (halves HBM traffic of the dominant operand) ----
    loss16, p16, n16 = model.train_step_forward(head, tail, neg, rel, mode="hr_t",
                                                neg_dtype=jnp.bfloat16)
    jax.block_until_ready((loss16, p16, n16))
    assert jnp.allclose(p16, p_ref, atol=1e-4), "pos score mismatch (bf16 path)"
    assert jnp.allclose(n16, n_ref, atol=3e-2), "neg score mismatch (bf16 path)"
    assert bool(jnp.isfinite(loss16)), "loss not finite (bf16 path)"

    print("KERNEL_OK")
</pallas_src>

<mosaic_0001>
module attributes {stable_mosaic.version = 11 : i64} {
  func.func @_neg_score_kernel(%arg0: i32, %arg1: i32, %arg2: memref<1x1x32xf32, #tpu.memory_space<vmem>>, %arg3: memref<1x1x32xf32, #tpu.memory_space<vmem>>, %arg4: memref<1x4x32xf32, #tpu.memory_space<vmem>>, %arg5: memref<1x1x32xf32, #tpu.memory_space<vmem>>, %arg6: memref<1x1xf32, #tpu.memory_space<smem>>, %arg7: memref<1x1x4xf32, #tpu.memory_space<vmem>>) attributes {dimension_semantics = [#tpu.dimension_semantics<parallel>, #tpu.dimension_semantics<parallel>], iteration_bounds = array<i64: 2, 1>, scalar_prefetch = 0 : i64, scratch_operands = 0 : i64, tpu.core_type = #tpu.core_type<tc>, window_params = [{transform_indices = @transform_0, window_bounds = array<i64: 1, 1, 32>}, {transform_indices = @transform_1, window_bounds = array<i64: 1, 1, 32>}, {transform_indices = @transform_2, window_bounds = array<i64: 1, 4, 32>}, {pipeline_mode = #tpu.pipeline_mode<synchronous>, transform_indices = @transform_3, window_bounds = array<i64: 1, 1, 32>}, {transform_indices = @transform_4, window_bounds = array<i64: 1, 1>}, {transform_indices = @transform_5, window_bounds = array<i64: 1, 1, 4>}]} {
    %c0 = arith.constant 0 : index
    %c0_0 = arith.constant 0 : index
    %0 = memref.load %arg6[%c0, %c0_0] : memref<1x1xf32, #tpu.memory_space<smem>>
    %c0_1 = arith.constant 0 : index
    %c0_2 = arith.constant 0 : index
    %c0_3 = arith.constant 0 : index
    %1 = vector.load %arg2[%c0_1, %c0_2, %c0_3] : memref<1x1x32xf32, #tpu.memory_space<vmem>>, vector<1x1x32xf32>
    %c0_4 = arith.constant 0 : index
    %c0_5 = arith.constant 0 : index
    %c0_6 = arith.constant 0 : index
    %2 = vector.load %arg3[%c0_4, %c0_5, %c0_6] : memref<1x1x32xf32, #tpu.memory_space<vmem>>, vector<1x1x32xf32>
    %3 = arith.mulf %1, %2 : vector<1x1x32xf32>
    %c0_7 = arith.constant 0 : index
    %c0_8 = arith.constant 0 : index
    %c0_9 = arith.constant 0 : index
    %4 = vector.load %arg5[%c0_7, %c0_8, %c0_9] : memref<1x1x32xf32, #tpu.memory_space<vmem>>, vector<1x1x32xf32>
    %5 = arith.mulf %3, %4 : vector<1x1x32xf32>
    %c0_10 = arith.constant 0 : index
    %c0_11 = arith.constant 0 : index
    %c0_12 = arith.constant 0 : index
    %6 = vector.load %arg4[%c0_10, %c0_11, %c0_12] : memref<1x4x32xf32, #tpu.memory_space<vmem>>, vector<1x4x32xf32>
    %cst = arith.constant dense<0.000000e+00> : vector<1x1x4xf32>
    %7 = tpu.matmul %5, %6, %cst {dimension_numbers = #tpu.dot_dimension_numbers<[2], [2], [1], [1], [0, 0, 0, 1, 1, 1], [0], [0]>} : vector<1x1x32xf32>, vector<1x4x32xf32>, vector<1x1x4xf32> -> vector<1x1x4xf32>
    %8 = vector.broadcast %0 : f32 to vector<1x1x4xf32>
    %9 = arith.addf %7, %8 : vector<1x1x4xf32>
    %10 = arith.negf %9 : vector<1x1x4xf32>
    %11 = math.exp %10 : vector<1x1x4xf32>
    %cst_13 = arith.constant 1.000000e+00 : f32
    %12 = vector.broadcast %cst_13 : f32 to vector<1x1x4xf32>
    %13 = arith.addf %12, %11 : vector<1x1x4xf32>
    %14 = arith.divf %12, %13 : vector<1x1x4xf32>
    %c0_14 = arith.constant 0 : index
    %c0_15 = arith.constant 0 : index
    %c0_16 = arith.constant 0 : index
    %15 = vector.load %arg7[%c0_14, %c0_15, %c0_16] : memref<1x1x4xf32, #tpu.memory_space<vmem>>, vector<1x1x4xf32>
    tpu.vector_store %arg7[%c0_14, %c0_15, %c0_16], %14 {strides = array<i32>} : memref<1x1x4xf32, #tpu.memory_space<vmem>>, vector<1x1x4xf32>,
    return
  }
  func.func @transform_0(%arg0: i32, %arg1: i32) -> (i32, i32, i32) {
    %c0_i32 = arith.constant 0 : i32
    %c0_i32_0 = arith.constant 0 : i32
    %c0_i32_1 = arith.constant 0 : i32
    return %arg0, %c0_i32, %c0_i32_0 : i32, i32, i32
  }
  func.func @transform_1(%arg0: i32, %arg1: i32) -> (i32, i32, i32) {
    %c0_i32 = arith.constant 0 : i32
    %c0_i32_0 = arith.constant 0 : i32
    %c0_i32_1 = arith.constant 0 : i32
    return %arg0, %c0_i32, %c0_i32_0 : i32, i32, i32
  }
  func.func @transform_2(%arg0: i32, %arg1: i32) -> (i32, i32, i32) {
    %c0_i32 = arith.constant 0 : i32
    %c0_i32_0 = arith.constant 0 : i32
    return %arg0, %arg1, %c0_i32 : i32, i32, i32
  }
  func.func @transform_3(%arg0: i32, %arg1: i32) -> (i32, i32, i32) {
    %c0_i32 = arith.constant 0 : i32
    %c0_i32_0 = arith.constant 0 : i32
    %c0_i32_1 = arith.constant 0 : i32
    %c0_i32_2 = arith.constant 0 : i32
    return %c0_i32, %c0_i32_0, %c0_i32_1 : i32, i32, i32
  }
  func.func @transform_4(%arg0: i32, %arg1: i32) -> (i32, i32) {
    %c0_i32 = arith.constant 0 : i32
    %c0_i32_0 = arith.constant 0 : i32
    %c0_i32_1 = arith.constant 0 : i32
    return %c0_i32, %c0_i32_0 : i32, i32
  }
  func.func @transform_5(%arg0: i32, %arg1: i32) -> (i32, i32, i32) {
    %c0_i32 = arith.constant 0 : i32
    %c0_i32_0 = arith.constant 0 : i32
    return %arg0, %c0_i32, %arg1 : i32, i32, i32
  }
}

</mosaic_0001>

<llo_original>
// kernel: tpu_custom_call.1
$region0: #{tpu_custom_call.1}
  #allocation0 [shape = 'u32[]', space=smem, size = 0x4, offset = 0x4, fixed_abs, tag = 'smem constant byte address 0x4 - core index']
  #allocation1 [shape = 'u32[144,128]{1,0:T(1,128)}', space=vmem, size = 0x12000, scoped, tag = 'internal scratch']
  #allocation2 [shape = 'f32[1,1]{1,0:T(1,128)S(6)}', space=smem, size = 0x200, scoped, tag = 'scoped memory for tpu_custom_call.1']
  %s0 = inlined_call_operand.vmem [shape: f32[2,1,32], index: 0, kind: input, shape index: {}]
  %s1 = inlined_call_operand.hbm [shape: f32[2,1,32], index: 1, kind: input, shape index: {}]
  %s2 = inlined_call_operand.hbm [shape: f32[2,4,32], index: 2, kind: input, shape index: {}]
  %s3 = inlined_call_operand.vmem [shape: f32[1,1,32], index: 3, kind: input, shape index: {}]
  %s4 = inlined_call_operand.<no memory space> [shape: f32[1,1], index: 4, kind: input, shape index: {}]
  %s5 = inlined_call_operand.hbm [shape: f32[2,1,4], index: 5, kind: output, shape index: {}]
  %s6 = sld [smem:[#allocation0]]
  $region61: #{tpu_custom_call.1} parent=0
    _
  %s8 = ssub.s32 1, %s6
  %s9 = scalar_select 0, %s8, %s6
  %10 = sst [smem:[#allocation2]] %s4
  $region1: #{tpu_custom_call.1} parent=0
    #allocation3 [shape = 'u8[1024]{0}', space=vmem, size = 0x400, scoped, tag = 'input window, operand 1']
    #allocation4 [shape = 's32[2]{0}', space=sflag, size = 0x8, scoped, tag = 'scoped memory for tpu_custom_call.1']
    #allocation5 [shape = 's32[2]{0}', space=sflag, size = 0x8, scoped, tag = 'scoped memory for tpu_custom_call.1']
    #allocation6 [shape = 'u8[4096]{0}', space=vmem, size = 0x1000, scoped, tag = 'input window, operand 2']
    #allocation7 [shape = 's32[2]{0}', space=sflag, size = 0x8, scoped, tag = 'scoped memory for tpu_custom_call.1']
    #allocation8 [shape = 'u8[1024]{0}', space=vmem, size = 0x400, scoped, tag = 'output window, operand 0']
    %11 = vsyncpa [#allocation4], 0
    %s12 = scalar_lea.sflag [#allocation4], 1
    %13 = vsyncpa %s12, 0
    %14 = vsyncpa [#allocation7], 0
    %s15 = scalar_lea.sflag [#allocation7], 1
    %16 = vsyncpa %s15, 0
    %17 = vsyncpa [#allocation5], 0
    %s18 = scalar_lea.sflag [#allocation5], 1
    %19 = vsyncpa %s18, 0
    loop: start=0, step=1, limit=4
    $region2: #{tpu_custom_call.1} parent=1 // loop_pre_header
      _
    $region3: #{tpu_custom_call.1} parent=1 // loop_header
      %s21 = sphi 0, %s25
      %p22 = scmp.ge.s32.totalorder %s21, 4
      %s28 = sphi 0, %s40
      %s29 = sphi 0, %s36
      %s30 = sphi 0, %s28
      %s31 = sphi 0, %s29
      %s32 = sphi 0, %s30
      %s33 = sphi 0, %s31
      %s43 = sphi 0, %s45
      %s46 = sphi 0, %s43
      %s47 = sphi 0, %s46
      %s63 = sphi 0, %s47
      %s69 = sphi 0, %s71
      %s72 = sphi 0, %s69
      %s73 = sphi 0, %s72
      %s89 = sphi 0, %s73
      %s97 = sphi 0, %s99
      %s100 = sphi 0, %s97
      %s101 = sphi 0, %s100
      %s117 = sphi 0, %s101
      %s121 = sphi 0, %s121
      %s123 = sphi 0, %s121
      %s124 = sphi 0, %s123
      %s138 = sphi 0, %s124
      %s142 = sphi 0, %s142
      %s144 = sphi 0, %s142
      %s145 = sphi 0, %s144
      %s159 = sphi 0, %s145
      %s167 = sphi 0, %s169
      %s170 = sphi 0, %s167
      %s171 = sphi 0, %s170
      %s187 = sphi 0, %s171
    $region4: #{tpu_custom_call.1} parent=1 // loop_header_branch
      %24 = sbr.rel (%p22) target = $region8
    $region5: #{tpu_custom_call.1} parent=1 // loop_body
      %s26 = ssub.s32 %s21, 1
      %s27 = ssub.s32 %s21, 2
      %s34 = sadd.s32 1, %s29
      %p35 = scmp.ge.s32.totalorder %s34, 1
      %s36 = scalar_select %p35, 0, %s34
      %s37 = sadd.s32 1, %s28
      %s38 = scalar_select %p35, %s37, %s28
      %p39 = scmp.ge.s32.totalorder %s38, 2
      %s40 = scalar_select %p39, 0, %s38
      %s41 = ssub.s32 %s28, %s40
      %p42 = scmp.eq.s32.totalorder %s41, 0
      %s44 = sadd.s32 %s43, 1
      %s45 = scalar_select %p42, %s43, %s44
      %p48 = pneg %p42
      %p49 = scmp.eq.s32.totalorder %s21, 1
      %p50 = por %p48, %p49
      %p51 = scmp.ne.s32.totalorder %s43, %s46
      %p52 = scmp.eq.s32.totalorder %s21, 0
      %p53 = por %p51, %p52
      %p54 = scmp.ne.s32.totalorder %s43, %s46
      %p55 = scmp.eq.s32.totalorder %s26, 1
      %p56 = por %p54, %p55
      %p57 = scmp.ne.s32.totalorder %s46, %s47
      %p58 = scmp.eq.s32.totalorder %s26, 0
      %p59 = por %p57, %p58
      %p60 = scmp.ne.s32.totalorder %s46, %s47
      %p61 = scmp.eq.s32.totalorder %s27, 1
      %p62 = por %p60, %p61
      %p64 = scmp.ne.s32.totalorder %s47, %s63
      %p65 = scmp.eq.s32.totalorder %s27, 0
      %p66 = por %p64, %p65
      %s67 = ssub.s32 %s28, %s40
      %p68 = scmp.eq.s32.totalorder %s67, 0
      %s70 = sadd.s32 %s69, 1
      %s71 = scalar_select %p68, %s69, %s70
      %p74 = pneg %p68
      %p75 = scmp.eq.s32.totalorder %s21, 1
      %p76 = por %p74, %p75
      %p77 = scmp.ne.s32.totalorder %s69, %s72
      %p78 = scmp.eq.s32.totalorder %s21, 0
      %p79 = por %p77, %p78
      %p80 = scmp.ne.s32.totalorder %s69, %s72
      %p81 = scmp.eq.s32.totalorder %s26, 1
      %p82 = por %p80, %p81
      %p83 = scmp.ne.s32.totalorder %s72, %s73
      %p84 = scmp.eq.s32.totalorder %s26, 0
      %p85 = por %p83, %p84
      %p86 = scmp.ne.s32.totalorder %s72, %s73
      %p87 = scmp.eq.s32.totalorder %s27, 1
      %p88 = por %p86, %p87
      %p90 = scmp.ne.s32.totalorder %s73, %s89
      %p91 = scmp.eq.s32.totalorder %s27, 0
      %p92 = por %p90, %p91
      %s93 = ssub.s32 %s28, %s40
      %s94 = ssub.s32 %s29, %s36
      %s95 = sor.u32 %s93, %s94
      %p96 = scmp.eq.s32.totalorder %s95, 0
      %s98 = sadd.s32 %s97, 1
      %s99 = scalar_select %p96, %s97, %s98
      %p102 = pneg %p96
      %p103 = scmp.eq.s32.totalorder %s21, 1
      %p104 = por %p102, %p103
      %p105 = scmp.ne.s32.totalorder %s97, %s100
      %p106 = scmp.eq.s32.totalorder %s21, 0
      %p107 = por %p105, %p106
      %p108 = scmp.ne.s32.totalorder %s97, %s100
      %p109 = scmp.eq.s32.totalorder %s26, 1
      %p110 = por %p108, %p109
      %p111 = scmp.ne.s32.totalorder %s100, %s101
      %p112 = scmp.eq.s32.totalorder %s26, 0
      %p113 = por %p111, %p112
      %p114 = scmp.ne.s32.totalorder %s100, %s101
      %p115 = scmp.eq.s32.totalorder %s27, 1
      %p116 = por %p114, %p115
      %p118 = scmp.ne.s32.totalorder %s101, %s117
      %p119 = scmp.eq.s32.totalorder %s27, 0
      %p120 = por %p118, %p119
      %s122 = sadd.s32 %s121, 1
      %p125 = scmp.eq.s32.totalorder %s21, 1
      %p126 = scmp.ne.s32.totalorder %s121, %s123
      %p127 = scmp.eq.s32.totalorder %s21, 0
      %p128 = por %p126, %p127
      %p129 = scmp.ne.s32.totalorder %s121, %s123
      %p130 = scmp.eq.s32.totalorder %s26, 1
      %p131 = por %p129, %p130
      %p132 = scmp.ne.s32.totalorder %s123, %s124
      %p133 = scmp.eq.s32.totalorder %s26, 0
      %p134 = por %p132, %p133
      %p135 = scmp.ne.s32.totalorder %s123, %s124
      %p136 = scmp.eq.s32.totalorder %s27, 1
      %p137 = por %p135, %p136
      %p139 = scmp.ne.s32.totalorder %s124, %s138
      %p140 = scmp.eq.s32.totalorder %s27, 0
      %p141 = por %p139, %p140
      %s143 = sadd.s32 %s142, 1
      %p146 = scmp.eq.s32.totalorder %s21, 1
      %p147 = scmp.ne.s32.totalorder %s142, %s144
      %p148 = scmp.eq.s32.totalorder %s21, 0
      %p149 = por %p147, %p148
      %p150 = scmp.ne.s32.totalorder %s142, %s144
      %p151 = scmp.eq.s32.totalorder %s26, 1
      %p152 = por %p150, %p151
      %p153 = scmp.ne.s32.totalorder %s144, %s145
      %p154 = scmp.eq.s32.totalorder %s26, 0
      %p155 = por %p153, %p154
      %p156 = scmp.ne.s32.totalorder %s144, %s145
      %p157 = scmp.eq.s32.totalorder %s27, 1
      %p158 = por %p156, %p157
      %p160 = scmp.ne.s32.totalorder %s145, %s159
      %p161 = scmp.eq.s32.totalorder %s27, 0
      %p162 = por %p160, %p161
      %s163 = ssub.s32 %s28, %s40
      %s164 = ssub.s32 %s29, %s36
      %s165 = sor.u32 %s163, %s164
      %p166 = scmp.eq.s32.totalorder %s165, 0
      %s168 = sadd.s32 %s167, 1
      %s169 = scalar_select %p166, %s167, %s168
      %p172 = pneg %p166
      %p173 = scmp.eq.s32.totalorder %s21, 1
      %p174 = por %p172, %p173
      %p175 = scmp.ne.s32.totalorder %s167, %s170
      %p176 = scmp.eq.s32.totalorder %s21, 0
      %p177 = por %p175, %p176
      %p178 = scmp.ne.s32.totalorder %s167, %s170
      %p179 = scmp.eq.s32.totalorder %s26, 1
      %p180 = por %p178, %p179
      %p181 = scmp.ne.s32.totalorder %s170, %s171
      %p182 = scmp.eq.s32.totalorder %s26, 0
      %p183 = por %p181, %p182
      %p184 = scmp.ne.s32.totalorder %s170, %s171
      %p185 = scmp.eq.s32.totalorder %s27, 1
      %p186 = por %p184, %p185
      %p188 = scmp.ne.s32.totalorder %s171, %s187
      %p189 = scmp.eq.s32.totalorder %s27, 0
      %p190 = por %p188, %p189
      %p191 = scmp.le.s32.totalorder 1, %s21
      %p192 = scmp.lt.s32.totalorder %s21, 3
      %p193 = pnand %p191, %p192
      %p194 = pneg %p193
      // Predicated region
      $region9: #{tpu_custom_call.1} parent=5 // pred_check
        _
      $region10: #{tpu_custom_call.1} parent=5 // pred_check_branch
        %196 = sbr.rel (%p193) target = $region12
      $region11: #{tpu_custom_call.1} parent=5 // pred_region
        %s197 = ssub.s32 %s21, 1
        // Predicated region
        $region13: #{tpu_custom_call.1} parent=11 // pred_check
          %p198 = pneg %p134
        $region14: #{tpu_custom_call.1} parent=11 // pred_check_branch
          %200 = sbr.rel (%p198) target = $region16
        $region15: #{tpu_custom_call.1} parent=11 // pred_region
          _
        $region16: #{tpu_custom_call.1} parent=11 // pred_fallthru
          _
        // Predicated region
        $region17: #{tpu_custom_call.1} parent=11 // pred_check
          %p201 = pneg %p155
        $region18: #{tpu_custom_call.1} parent=11 // pred_check_branch
          %203 = sbr.rel (%p201) target = $region20
        $region19: #{tpu_custom_call.1} parent=11 // pred_region
          _
        $region20: #{tpu_custom_call.1} parent=11 // pred_fallthru
          _
      $region12: #{tpu_custom_call.1} parent=5 // pred_fallthru
        _
      %p204 = scmp.lt.s32.totalorder %s21, 2
      // Predicated region
      $region21: #{tpu_custom_call.1} parent=5 // pred_check
        %p205 = pneg %p204
      $region22: #{tpu_custom_call.1} parent=5 // pred_check_branch
        %207 = sbr.rel (%p205) target = $region24
      $region23: #{tpu_custom_call.1} parent=5 // pred_region
        // Predicated region
        $region25: #{tpu_custom_call.1} parent=23 // pred_check
          %p208 = pneg %p53
        $region26: #{tpu_custom_call.1} parent=23 // pred_check_branch
          %210 = sbr.rel (%p208) target = $region28
        $region27: #{tpu_custom_call.1} parent=23 // pred_region
          %p211 = scmp.lt.s32.totalorder %s28, 1
          %s212 = scalar_select %p211, %s28, 1
          %s213 = scalar_lea.vmem %s0, %s212
        $region28: #{tpu_custom_call.1} parent=23 // pred_fallthru
          _
        // Predicated region
        $region29: #{tpu_custom_call.1} parent=23 // pred_check
          %p214 = pneg %p79
        $region30: #{tpu_custom_call.1} parent=23 // pred_check_branch
          %216 = sbr.rel (%p214) target = $region32
        $region31: #{tpu_custom_call.1} parent=23 // pred_region
          %s217 = sand.u32 %s69, 1
          %s218 = scalar_lea.sflag [#allocation4], %s217
          %s219 = sand.u32 %s69, 1
          %s220 = scalar_lea.vmem [#allocation3], %s219
          %s222 = ssub.s32 16, 16
          %223 = vsyncadd %s218, %s222
          %s224 = smul.addr %s28, 16
          %s225 = scalar_lea.hbm %s1, %s224
          %s227 = sshll.u32 %s220, 4
          %s228 = int_to_ptr.vmem [resolvable:$true] %s227
          %230 = dma.hbm_to_vmem [thread:$0]  %s225, 16, %s228, %s218
        $region32: #{tpu_custom_call.1} parent=23 // pred_fallthru
          _
        // Predicated region
        $region33: #{tpu_custom_call.1} parent=23 // pred_check
          %p231 = pneg %p107
        $region34: #{tpu_custom_call.1} parent=23 // pred_check_branch
          %233 = sbr.rel (%p231) target = $region36
        $region35: #{tpu_custom_call.1} parent=23 // pred_region
          %s234 = sand.u32 %s97, 1
          %s235 = scalar_lea.sflag [#allocation7], %s234
          %s236 = sand.u32 %s97, 1
          %s237 = smul.addr %s236, 4
          %s238 = scalar_lea.vmem [#allocation6], %s237
          %s240 = ssub.s32 64, 64
          %241 = vsyncadd %s235, %s240
          %s242 = sadd.s32 %s29, %s28
          %s243 = smul.addr %s242, 64
          %s244 = scalar_lea.hbm %s2, %s243
          %s246 = sshll.u32 %s238, 4
          %s247 = int_to_ptr.vmem [resolvable:$true] %s246
          %249 = dma.hbm_to_vmem [thread:$0]  %s244, 64, %s247, %s235
        $region36: #{tpu_custom_call.1} parent=23 // pred_fallthru
          _
      $region24: #{tpu_custom_call.1} parent=5 // pred_fallthru
        _
      %p250 = scmp.le.s32.totalorder 1, %s21
      %p251 = scmp.lt.s32.totalorder %s21, 3
      %p252 = pnand %p250, %p251
      %p253 = pneg %p252
      // Predicated region
      $region37: #{tpu_custom_call.1} parent=5 // pred_check
        _
      $region38: #{tpu_custom_call.1} parent=5 // pred_check_branch
        %255 = sbr.rel (%p252) target = $region40
      $region39: #{tpu_custom_call.1} parent=5 // pred_region
        %s256 = ssub.s32 %s21, 1
        %s257 = sand.u32 %s72, 1
        %s258 = scalar_lea.sflag [#allocation4], %s257
        %s259 = sand.u32 %s72, 1
        %s260 = scalar_lea.vmem [#allocation3], %s259
        // Predicated region
        $region41: #{tpu_custom_call.1} parent=39 // pred_check
          %p261 = pneg %p85
        $region42: #{tpu_custom_call.1} parent=39 // pred_check_branch
          %263 = sbr.rel (%p261) target = $region44
        $region43: #{tpu_custom_call.1} parent=39 // pred_region
          %264 = dma.done %s258, 16
        $region44: #{tpu_custom_call.1} parent=39 // pred_fallthru
          _
        %s265 = sand.u32 %s100, 1
        %s266 = scalar_lea.sflag [#allocation7], %s265
        %s267 = sand.u32 %s100, 1
        %s268 = smul.addr %s267, 4
        %s269 = scalar_lea.vmem [#allocation6], %s268
        // Predicated region
        $region45: #{tpu_custom_call.1} parent=39 // pred_check
          %p270 = pneg %p113
        $region46: #{tpu_custom_call.1} parent=39 // pred_check_branch
          %272 = sbr.rel (%p270) target = $region48
        $region47: #{tpu_custom_call.1} parent=39 // pred_region
          %273 = dma.done %s266, 64
        $region48: #{tpu_custom_call.1} parent=39 // pred_fallthru
          _
        %p274 = scmp.lt.s32.totalorder %s30, 1
        %s275 = scalar_select %p274, %s30, 1
        %s276 = scalar_lea.vmem %s0, %s275
        %p277 = pneg %p59
        %p278 = pneg %p56
        %s279 = sand.u32 %s72, 1
        %s280 = scalar_lea.sflag [#allocation4], %s279
        %s281 = sand.u32 %s72, 1
        %s282 = scalar_lea.vmem [#allocation3], %s281
        %p283 = pneg %p85
        %p284 = pneg %p82
        %s285 = sand.u32 %s100, 1
        %s286 = scalar_lea.sflag [#allocation7], %s285
        %s287 = sand.u32 %s100, 1
        %s288 = smul.addr %s287, 4
        %s289 = scalar_lea.vmem [#allocation6], %s288
        %p290 = pneg %p113
        %p291 = pneg %p110
        %p292 = pneg %p134
        %p293 = pneg %p131
        %p294 = pneg %p155
        %p295 = pneg %p152
        %p296 = pneg %p183
        %p297 = pneg %p180
        %s298 = sand.u32 %s170, 1
        %s299 = scalar_lea.sflag [#allocation5], %s298
        %s300 = sand.u32 %s170, 1
        %s301 = scalar_lea.vmem [#allocation8], %s300
        %p302 = scmp.lt.s32.totalorder %s30, 1
        %s303 = scalar_select %p302, %s30, 1
        %s304 = scalar_lea.vmem %s0, %s303
        %s305 = sld [smem:[#allocation2]]
        %v306 = vld [vmem:[%s304] sm:$0x1]
        %v307 = vld [vmem:[%s260] sm:$0x1]
        %v308 = vmul.f32 %v306, %v307
        %v309 = vld [vmem:[%s3] sm:$0x1]
        %v310 = vmul.f32 %v308, %v309
        %v311 = vld [vmem:[%s269] sm:$0xf]
        %v312 = vstv %s305
        %vm313 = vcmask 261120
        %v315 = vsel %vm313, %v310, 0
        %v318 = vsel %vm313, %v311, 0
        %320 = vmatprep.subr.mxu0 0.0
        %321 = vmatpush1.xpose.msra.mxu0 0.0
        %322 = vmatprep.subr.mxu0 0.0
        %323 = vmatpush1.xpose.msra.mxu0 0.0
        %324 = vmatprep.subr.mxu0 0.0
        %325 = vmatpush1.xpose.msra.mxu0 0.0
        %326 = vmatprep.subr.mxu0 0.0
        %327 = vmatpush1.xpose.msra.mxu0 0.0
        %328 = vmatprep.subr.mxu0 0.0
        %329 = vmatpush1.xpose.msra.mxu0 0.0
        %330 = vmatprep.subr.mxu0 0.0
        %331 = vmatpush1.xpose.msra.mxu0 0.0
        %332 = vmatprep.subr.mxu0 0.0
        %333 = vmatpush1.xpose.msra.mxu0 0.0
        %334 = vmatprep.subr.mxu0 0.0
        %335 = vmatpush1.xpose.msra.mxu0 0.0
        %336 = vmatprep.subr.mxu0 0.0
        %337 = vmatpush1.xpose.msra.mxu0 0.0
        %338 = vmatprep.subr.mxu0 0.0
        %339 = vmatpush1.xpose.msra.mxu0 0.0
        %340 = vmatprep.subr.mxu0 0.0
        %341 = vmatpush1.xpose.msra.mxu0 0.0
        %342 = vmatprep.subr.mxu0 0.0
        %343 = vmatpush1.xpose.msra.mxu0 0.0
        %344 = vmatprep.subr.mxu0 0.0
        %345 = vmatpush1.xpose.msra.mxu0 0.0
        %346 = vmatprep.subr.mxu0 0.0
        %347 = vmatpush1.xpose.msra.mxu0 0.0
        %348 = vmatprep.subr.mxu0 0.0
        %349 = vmatpush1.xpose.msra.mxu0 0.0
        %350 = vmatprep.subr.mxu0 0.0
        %351 = vmatpush1.xpose.msra.mxu0 %v318
        %352 = vmatprep.subr.mxu0 0.0
        %353 = vmatpush2.xpose.msra.mxu0 0.0
        %354 = vmatprep.subr.mxu0 0.0
        %355 = vmatpush2.xpose.msra.mxu0 0.0
        %356 = vmatprep.subr.mxu0 0.0
        %357 = vmatpush2.xpose.msra.mxu0 0.0
        %358 = vmatprep.subr.mxu0 0.0
        %359 = vmatpush2.xpose.msra.mxu0 0.0
        %360 = vmatprep.subr.mxu0 0.0
        %361 = vmatpush2.xpose.msra.mxu0 0.0
        %362 = vmatprep.subr.mxu0 0.0
        %363 = vmatpush2.xpose.msra.mxu0 0.0
        %364 = vmatprep.subr.mxu0 0.0
        %365 = vmatpush2.xpose.msra.mxu0 0.0
        %366 = vmatprep.subr.mxu0 0.0
        %367 = vmatpush2.xpose.msra.mxu0 0.0
        %368 = vmatprep.subr.mxu0 0.0
        %369 = vmatpush2.xpose.msra.mxu0 0.0
        %370 = vmatprep.subr.mxu0 0.0
        %371 = vmatpush2.xpose.msra.mxu0 0.0
        %372 = vmatprep.subr.mxu0 0.0
        %373 = vmatpush2.xpose.msra.mxu0 0.0
        %374 = vmatprep.subr.mxu0 0.0
        %375 = vmatpush2.xpose.msra.mxu0 0.0
        %376 = vmatprep.subr.mxu0 0.0
        %377 = vmatpush2.xpose.msra.mxu0 0.0
        %378 = vmatprep.subr.mxu0 0.0
        %379 = vmatpush2.xpose.msra.mxu0 0.0
        %380 = vmatprep.subr.mxu0 0.0
        %381 = vmatpush2.xpose.msra.mxu0 0.0
        %382 = vmatprep.subr.mxu0 0.0
        %383 = vmatpush2.xpose.msra.mxu0 0.0
        %384 = vmatprep.mubr.f32.mxu0 0.0
        %385 = vmatmul.mubr.f32.gmra.mxu0 %v315
        %v386 = vpop.f32.mrf.mxu0
        %v387 = vadd.f32 %v312, %v386
        %v388 = vpop.f32.mrf.mxu0
        %389 = vdwg.mxu0
        %v390 = vxor.u32 %v387, 2147483648
        %v391 = vmul.f32 %v390, 1.442695
        %v392 = vpow.pop %v391
        %v393 = vadd.f32 %v392, 1.0
        %v394 = vrcp.pop %v393
        %v395 = vmul.f32 1.0, %v394
        %vm396 = vcmask 24576
        %397 = vst.msk [vmem:[%s301] sm:$0x1] %vm396, %v395
        %s398 = sand.u32 %s170, 1
        %s399 = scalar_lea.sflag [#allocation5], %s398
        %s400 = sand.u32 %s170, 1
        %s401 = scalar_lea.vmem [#allocation8], %s400
        // Predicated region
        $region49: #{tpu_custom_call.1} parent=39 // pred_check
          %p402 = pneg %p180
        $region50: #{tpu_custom_call.1} parent=39 // pred_check_branch
          %404 = sbr.rel (%p402) target = $region52
        $region51: #{tpu_custom_call.1} parent=39 // pred_region
          %s406 = ssub.s32 16, 16
          %407 = vsyncadd %s399, %s406
          %s408 = sadd.s32 %s31, %s30
          %s409 = smul.addr %s408, 16
          %s410 = scalar_lea.hbm %s5, %s409
          %s412 = sshll.u32 %s401, 4
          %s413 = int_to_ptr.vmem [resolvable:$true] %s412
          %415 = dma.vmem_to_hbm [thread:$0]  %s413, 16, %s410, %s399
        $region52: #{tpu_custom_call.1} parent=39 // pred_fallthru
          _
      $region40: #{tpu_custom_call.1} parent=5 // pred_fallthru
        _
      %p416 = scmp.le.s32.totalorder 2, %s21
      // Predicated region
      $region53: #{tpu_custom_call.1} parent=5 // pred_check
        %p417 = pneg %p416
      $region54: #{tpu_custom_call.1} parent=5 // pred_check_branch
        %419 = sbr.rel (%p417) target = $region56
      $region55: #{tpu_custom_call.1} parent=5 // pred_region
        %s420 = ssub.s32 %s21, 2
        // Predicated region
        $region57: #{tpu_custom_call.1} parent=55 // pred_check
          %p421 = pneg %p186
        $region58: #{tpu_custom_call.1} parent=55 // pred_check_branch
          %423 = sbr.rel (%p421) target = $region60
        $region59: #{tpu_custom_call.1} parent=55 // pred_region
          %s424 = sand.u32 %s171, 1
          %s425 = scalar_lea.sflag [#allocation5], %s424
          %s426 = sand.u32 %s171, 1
          %s427 = scalar_lea.vmem [#allocation8], %s426
          %428 = dma.done %s425, 16
        $region60: #{tpu_custom_call.1} parent=55 // pred_fallthru
          _
      $region56: #{tpu_custom_call.1} parent=5 // pred_fallthru
        _
    $region6: #{tpu_custom_call.1} parent=1 // loop_footer
      %s25 = sadd.s32 1, %s21
    $region7: #{tpu_custom_call.1} parent=1 // loop_footer_branch
      %20 = sbr.rel target = $region3
    $region8: #{tpu_custom_call.1} parent=1 // loop_exit
      _
    %429 = vsyncpa [#allocation4], 1
    %s430 = scalar_lea.sflag [#allocation4], 1
    %431 = vsyncpa %s430, 1
    %432 = vsyncpa [#allocation7], 1
    %s433 = scalar_lea.sflag [#allocation7], 1
    %434 = vsyncpa %s433, 1
    %435 = vsyncpa [#allocation5], 1
    %s436 = scalar_lea.sflag [#allocation5], 1
    %437 = vsyncpa %s436, 1

</llo_original>
